<compile_context>
chip_gen: v6e
topology: v6e:2x2x1
jax: 0.10.0
libtpu: 0.0.40
codegen_flags: <defaults>
</compile_context>

<pallas_src>
import functools

import jax
import jax.numpy as jnp
from jax.experimental import pallas as pl
from jax.experimental.pallas import tpu as pltpu


def _round_up(x, m):
    return (x + m - 1) // m * m


def _slab_offsets(sd, ad, h2):
    """Row offsets of (W1 [s;a rows], W2, W3) inside the packed weight slab."""
    o1 = 0
    o2 = _round_up(o1 + sd + ad, 8)
    o3 = _round_up(o2 + h2, 8)
    return o1, o2, o3


def _pick_batch_tile(B, cap=1024):
    """Large tiles amortize the ~0.35us/step grid overhead; for multi-step
    grids force an EVEN number of steps so the 'parallel' batch axis
    load-balances across v7x's two TensorCores (no-op on v5e/v6e)."""
    if B <= cap:
        return _round_up(B, 8)
    steps = -(-B // cap)
    if steps % 2:
        steps += 1
    return _round_up(-(-B // steps), 8)


def _critic_kernel(s_ref, a_ref, w_ref, b_ref, q_ref, sa_ref, *,
                   sd, ad, h2, n3, offs, bf16_dots):
    """Fused twin-Q forward: 3 matmuls, q1/q2 packed along the lane dim."""
    o1, o2, o3 = offs

    # Assemble [s | a] in VMEM scratch (masked lane stores; VPU/vst work only,
    # no MXU pushes, no wrapper-side HBM round trip).  Padded rows of a
    # partial last batch block flow through harmlessly (ReLU/matmul only) and
    # are masked on the final store.
    sa_ref[:, 0:sd] = s_ref[...]
    sa_ref[:, sd:sd + ad] = a_ref[...]
    sa = sa_ref[...]

    def dot(x, w):
        if bf16_dots:
            x = x.astype(jnp.bfloat16)   # operands only; fp32 accumulate
        return jnp.dot(x, w, preferred_element_type=jnp.float32)

    # Layer 1 (both heads, ONE K=sd+ad matmul): relu(sa @ W1 + b1) -> (bt, 2H)
    h = dot(sa, w_ref[o1:o1 + sd + ad, :]) + b_ref[0:1, :]
    h = jnp.maximum(h, 0.0)

    # Layer 2 (block_diag(w2, w5)): relu(h @ W2 + b2)              -> (bt, 2H)
    h = dot(h, w_ref[o2:o2 + h2, :]) + b_ref[1:2, :]
    h = jnp.maximum(h, 0.0)

    # Layer 3 (block_diag(w3, w6)), zero-padded to n3 = min(2H, 128) output
    # lanes.  Only lanes 0 (q1) and 1 (q2) are meaningful.
    q = dot(h, w_ref[o3:o3 + h2, 0:n3]) + b_ref[2:3, 0:n3]
    q_ref[...] = q[:, 0:2]


def pack_critic_params(params, state_dim, dtype=jnp.float32):
    """Pack the 12 raw Linear params into one weight slab + one bias slab.

    Call once (outside the hot path); critic_forward consumes the slabs.
    Pass dtype=jnp.bfloat16 for the flag-gated fast-MXU path (v6e/v7x);
    biases always stay fp32.
    """
    w1, w2, w3 = params["w1"], params["w2"], params["w3"]
    w4, w5, w6 = params["w4"], params["w5"], params["w6"]
    in1, hw = w1.shape
    sd = state_dim
    ad = in1 - state_dim
    h2 = 2 * hw
    n3 = min(h2, 128)

    # Layer 1: lane-concat the two heads.  Rows [0:sd] consume s, rows
    # [sd:sd+ad] consume a; kept contiguous so the kernel does ONE dot.
    w1p = jnp.concatenate([w1, w4], axis=1)                       # (sd+ad, 2H)

    # Layer 2: block_diag(w2, w5)                                   (2H, 2H)
    zhh = jnp.zeros((hw, hw), jnp.float32)
    w2p = jnp.concatenate(
        [jnp.concatenate([w2, zhh], axis=1),
         jnp.concatenate([zhh, w5], axis=1)], axis=0)

    # Layer 3: block_diag(w3, w6), zero-padded to n3 output lanes.
    zh1 = jnp.zeros((hw, 1), jnp.float32)
    w3p = jnp.concatenate(
        [jnp.concatenate([w3, zh1], axis=1),
         jnp.concatenate([zh1, w6], axis=1)], axis=0)              # (2H, 2)
    w3p = jnp.pad(w3p, ((0, 0), (0, n3 - 2)))                      # (2H, n3)

    o1, o2, o3 = _slab_offsets(sd, ad, h2)
    total_rows = o3 + h2
    wslab = jnp.zeros((total_rows, h2), jnp.float32)
    wslab = wslab.at[o1:o1 + sd + ad, :].set(w1p)
    wslab = wslab.at[o2:o2 + h2, :].set(w2p)
    wslab = wslab.at[o3:o3 + h2, 0:n3].set(w3p)

    b1p = jnp.concatenate([params["b1"], params["b4"]], axis=1)    # (1, 2H)
    b2p = jnp.concatenate([params["b2"], params["b5"]], axis=1)    # (1, 2H)
    b3p = jnp.pad(jnp.concatenate([params["b3"], params["b6"]], axis=1),
                  ((0, 0), (0, h2 - 2)))                           # (1, 2H)
    bslab = jnp.concatenate([b1p, b2p, b3p], axis=0)               # (3, 2H)
    return wslab.astype(dtype), bslab.astype(jnp.float32)


def critic_forward(s, a, wslab, bslab, *, bt_cap=1024):
    """Pallas implementation of Critic.forward(s, a) -> (q1, q2)."""
    B, sd = s.shape
    ad = a.shape[1]
    h2 = bslab.shape[1]
    n3 = min(h2, 128)
    offs = _slab_offsets(sd, ad, h2)
    bf16_dots = (wslab.dtype == jnp.bfloat16)

    bt = _pick_batch_tile(B, bt_cap)
    grid = (pl.cdiv(B, bt),)

    kernel = functools.partial(_critic_kernel, sd=sd, ad=ad, h2=h2, n3=n3,
                               offs=offs, bf16_dots=bf16_dots)

    flops = 2 * B * ((sd + ad) * h2 + h2 * h2 + h2 * n3)
    bytes_accessed = (s.size * 4 + a.size * 4
                      + wslab.size * wslab.dtype.itemsize
                      + bslab.size * 4 + B * 2 * 4)

    q = pl.pallas_call(
        kernel,
        out_shape=jax.ShapeDtypeStruct((B, 2), jnp.float32),
        grid=grid,
        in_specs=[
            pl.BlockSpec((bt, sd), lambda i: (i, 0)),          # s batch tile
            pl.BlockSpec((bt, ad), lambda i: (i, 0)),          # a batch tile
            pl.BlockSpec(wslab.shape, lambda i: (0, 0)),       # weights resident
            pl.BlockSpec(bslab.shape, lambda i: (0, 0)),       # biases resident
        ],
        out_specs=pl.BlockSpec((bt, 2), lambda i: (i, 0)),     # lane-packed q
        scratch_shapes=[pltpu.VMEM((bt, sd + ad), jnp.float32)],  # [s | a]
        compiler_params=pltpu.CompilerParams(
            dimension_semantics=("parallel",)),
        cost_estimate=pl.CostEstimate(
            flops=int(flops), transcendentals=0,
            bytes_accessed=int(bytes_accessed)),
    )(s, a, wslab, bslab)

    return q[:, 0:1], q[:, 1:2]


def init_critic_params(key, state_dim, action_dim, hidden_width):
    """PyTorch nn.Linear-style init (uniform(-1/sqrt(fan_in), 1/sqrt(fan_in))).
    Weights stored as [in_features, out_features]; biases as [1, out]."""
    dims = [
        (state_dim + action_dim, hidden_width),  # l1
        (hidden_width, hidden_width),            # l2
        (hidden_width, 1),                       # l3
        (state_dim + action_dim, hidden_width),  # l4
        (hidden_width, hidden_width),            # l5
        (hidden_width, 1),                       # l6
    ]
    params = {}
    keys = jax.random.split(key, 2 * len(dims))
    for i, (fan_in, fan_out) in enumerate(dims):
        bound = 1.0 / (fan_in ** 0.5)
        params[f"w{i + 1}"] = jax.random.uniform(
            keys[2 * i], (fan_in, fan_out), jnp.float32, -bound, bound)
        params[f"b{i + 1}"] = jax.random.uniform(
            keys[2 * i + 1], (1, fan_out), jnp.float32, -bound, bound)
    return params


def critic_reference(s, a, params):
    """Pure-JAX reference mirroring the PyTorch module."""
    sa = jnp.concatenate([s, a], axis=1)
    h = jnp.maximum(sa @ params["w1"] + params["b1"], 0.0)
    h = jnp.maximum(h @ params["w2"] + params["b2"], 0.0)
    q1 = h @ params["w3"] + params["b3"]
    g = jnp.maximum(sa @ params["w4"] + params["b4"], 0.0)
    g = jnp.maximum(g @ params["w5"] + params["b5"], 0.0)
    q2 = g @ params["w6"] + params["b6"]
    return q1, q2


if __name__ == "__main__":
    state_dim, action_dim, hidden_width = 12, 4, 32
    batch = 8

    key = jax.random.PRNGKey(0)
    k_params, k_s, k_a = jax.random.split(key, 3)

    params = init_critic_params(k_params, state_dim, action_dim, hidden_width)
    s = jax.random.normal(k_s, (batch, state_dim), jnp.float32)
    a = jax.random.normal(k_a, (batch, action_dim), jnp.float32)

    r1, r2 = critic_reference(s, a, params)

    # Default fp32 path: exact parity with the PyTorch module.
    wslab, bslab = pack_critic_params(params, state_dim)
    q1, q2 = critic_forward(s, a, wslab, bslab)
    q1 = jax.block_until_ready(q1)
    q2 = jax.block_until_ready(q2)
    assert q1.shape == (batch, 1) and q2.shape == (batch, 1)
    assert jnp.allclose(q1, r1, atol=1e-5, rtol=1e-5)
    assert jnp.allclose(q2, r2, atol=1e-5, rtol=1e-5)

    # Flag-gated bf16-operand path (v6e/v7x MXU fast path, fp32 accumulate):
    # relaxed tolerance since it intentionally breaks exact fp32 parity.
    wslab_bf, bslab_bf = pack_critic_params(params, state_dim,
                                            dtype=jnp.bfloat16)
    p1, p2 = critic_forward(s, a, wslab_bf, bslab_bf)
    p1 = jax.block_until_ready(p1)
    p2 = jax.block_until_ready(p2)
    assert jnp.allclose(p1, r1, atol=5e-2, rtol=5e-2)
    assert jnp.allclose(p2, r2, atol=5e-2, rtol=5e-2)

    print("KERNEL_OK")
</pallas_src>

<mosaic_0001>
module attributes {stable_mosaic.version = 11 : i64} {
  func.func @_critic_kernel(%arg0: i32, %arg1: memref<8x12xf32, #tpu.memory_space<vmem>>, %arg2: memref<8x4xf32, #tpu.memory_space<vmem>>, %arg3: memref<144x64xf32, #tpu.memory_space<vmem>>, %arg4: memref<3x64xf32, #tpu.memory_space<vmem>>, %arg5: memref<8x2xf32, #tpu.memory_space<vmem>>, %arg6: memref<8x16xf32, #tpu.memory_space<vmem>>) attributes {dimension_semantics = [#tpu.dimension_semantics<parallel>], iteration_bounds = array<i64: 1>, scalar_prefetch = 0 : i64, scratch_operands = 1 : i64, tpu.core_type = #tpu.core_type<tc>, window_params = [{transform_indices = @transform_0, window_bounds = array<i64: 8, 12>}, {transform_indices = @transform_1, window_bounds = array<i64: 8, 4>}, {pipeline_mode = #tpu.pipeline_mode<synchronous>, transform_indices = @transform_2, window_bounds = array<i64: 144, 64>}, {pipeline_mode = #tpu.pipeline_mode<synchronous>, transform_indices = @transform_3, window_bounds = array<i64: 3, 64>}, {transform_indices = @transform_4, window_bounds = array<i64: 8, 2>}]} {
    %c0 = arith.constant 0 : index
    %c0_0 = arith.constant 0 : index
    %0 = vector.load %arg1[%c0, %c0_0] : memref<8x12xf32, #tpu.memory_space<vmem>>, vector<8x12xf32>
    %c0_1 = arith.constant 0 : index
    %c0_2 = arith.constant 0 : index
    %1 = vector.load %arg6[%c0_1, %c0_2] : memref<8x16xf32, #tpu.memory_space<vmem>>, vector<8x12xf32>
    tpu.vector_store %arg6[%c0_1, %c0_2], %0 {strides = array<i32>} : memref<8x16xf32, #tpu.memory_space<vmem>>, vector<8x12xf32>,
    %c0_3 = arith.constant 0 : index
    %c0_4 = arith.constant 0 : index
    %2 = vector.load %arg2[%c0_3, %c0_4] : memref<8x4xf32, #tpu.memory_space<vmem>>, vector<8x4xf32>
    %c0_5 = arith.constant 0 : index
    %c12 = arith.constant 12 : index
    %3 = vector.load %arg6[%c0_5, %c12] : memref<8x16xf32, #tpu.memory_space<vmem>>, vector<8x4xf32>
    tpu.vector_store %arg6[%c0_5, %c12], %2 {strides = array<i32>} : memref<8x16xf32, #tpu.memory_space<vmem>>, vector<8x4xf32>,
    %c0_6 = arith.constant 0 : index
    %c0_7 = arith.constant 0 : index
    %4 = vector.load %arg6[%c0_6, %c0_7] : memref<8x16xf32, #tpu.memory_space<vmem>>, vector<8x16xf32>
    %c0_8 = arith.constant 0 : index
    %c0_9 = arith.constant 0 : index
    %5 = vector.load %arg3[%c0_8, %c0_9] : memref<144x64xf32, #tpu.memory_space<vmem>>, vector<16x64xf32>
    %cst = arith.constant dense<0.000000e+00> : vector<8x64xf32>
    %6 = tpu.matmul %4, %5, %cst {dimension_numbers = #tpu.dot_dimension_numbers<[1], [0], [0], [1], [0, 0, 1, 1], [], []>} : vector<8x16xf32>, vector<16x64xf32>, vector<8x64xf32> -> vector<8x64xf32>
    %c0_10 = arith.constant 0 : index
    %c0_11 = arith.constant 0 : index
    %7 = vector.load %arg4[%c0_10, %c0_11] : memref<3x64xf32, #tpu.memory_space<vmem>>, vector<1x64xf32>
    %8 = vector.broadcast %7 : vector<1x64xf32> to vector<8x64xf32>
    %9 = arith.addf %6, %8 : vector<8x64xf32>
    %cst_12 = arith.constant 0.000000e+00 : f32
    %10 = vector.broadcast %cst_12 : f32 to vector<8x64xf32>
    %11 = arith.maximumf %9, %10 : vector<8x64xf32>
    %c16 = arith.constant 16 : index
    %c0_13 = arith.constant 0 : index
    %12 = vector.load %arg3[%c16, %c0_13] : memref<144x64xf32, #tpu.memory_space<vmem>>, vector<64x64xf32>
    %cst_14 = arith.constant dense<0.000000e+00> : vector<8x64xf32>
    %13 = tpu.matmul %11, %12, %cst_14 {dimension_numbers = #tpu.dot_dimension_numbers<[1], [0], [0], [1], [0, 0, 1, 1], [], []>} : vector<8x64xf32>, vector<64x64xf32>, vector<8x64xf32> -> vector<8x64xf32>
    %c1 = arith.constant 1 : index
    %c0_15 = arith.constant 0 : index
    %14 = vector.load %arg4[%c1, %c0_15] : memref<3x64xf32, #tpu.memory_space<vmem>>, vector<1x64xf32>
    %15 = vector.broadcast %14 : vector<1x64xf32> to vector<8x64xf32>
    %16 = arith.addf %13, %15 : vector<8x64xf32>
    %cst_16 = arith.constant 0.000000e+00 : f32
    %17 = vector.broadcast %cst_16 : f32 to vector<8x64xf32>
    %18 = arith.maximumf %16, %17 : vector<8x64xf32>
    %c80 = arith.constant 80 : index
    %c0_17 = arith.constant 0 : index
    %19 = vector.load %arg3[%c80, %c0_17] : memref<144x64xf32, #tpu.memory_space<vmem>>, vector<64x64xf32>
    %cst_18 = arith.constant dense<0.000000e+00> : vector<8x64xf32>
    %20 = tpu.matmul %18, %19, %cst_18 {dimension_numbers = #tpu.dot_dimension_numbers<[1], [0], [0], [1], [0, 0, 1, 1], [], []>} : vector<8x64xf32>, vector<64x64xf32>, vector<8x64xf32> -> vector<8x64xf32>
    %c2 = arith.constant 2 : index
    %c0_19 = arith.constant 0 : index
    %21 = vector.load %arg4[%c2, %c0_19] : memref<3x64xf32, #tpu.memory_space<vmem>>, vector<1x64xf32>
    %22 = vector.broadcast %21 : vector<1x64xf32> to vector<8x64xf32>
    %23 = arith.addf %20, %22 : vector<8x64xf32>
    %24 = vector.extract_strided_slice %23 {offsets = [0, 0], sizes = [8, 2], strides = [1, 1]} : vector<8x64xf32> to vector<8x2xf32>
    %c0_20 = arith.constant 0 : index
    %c0_21 = arith.constant 0 : index
    %25 = vector.load %arg5[%c0_20, %c0_21] : memref<8x2xf32, #tpu.memory_space<vmem>>, vector<8x2xf32>
    tpu.vector_store %arg5[%c0_20, %c0_21], %24 {strides = array<i32>} : memref<8x2xf32, #tpu.memory_space<vmem>>, vector<8x2xf32>,
    return
  }
  func.func @transform_0(%arg0: i32) -> (i32, i32) {
    %c0_i32 = arith.constant 0 : i32
    %c0_i32_0 = arith.constant 0 : i32
    return %arg0, %c0_i32 : i32, i32
  }
  func.func @transform_1(%arg0: i32) -> (i32, i32) {
    %c0_i32 = arith.constant 0 : i32
    %c0_i32_0 = arith.constant 0 : i32
    return %arg0, %c0_i32 : i32, i32
  }
  func.func @transform_2(%arg0: i32) -> (i32, i32) {
    %c0_i32 = arith.constant 0 : i32
    %c0_i32_0 = arith.constant 0 : i32
    %c0_i32_1 = arith.constant 0 : i32
    return %c0_i32, %c0_i32_0 : i32, i32
  }
  func.func @transform_3(%arg0: i32) -> (i32, i32) {
    %c0_i32 = arith.constant 0 : i32
    %c0_i32_0 = arith.constant 0 : i32
    %c0_i32_1 = arith.constant 0 : i32
    return %c0_i32, %c0_i32_0 : i32, i32
  }
  func.func @transform_4(%arg0: i32) -> (i32, i32) {
    %c0_i32 = arith.constant 0 : i32
    %c0_i32_0 = arith.constant 0 : i32
    return %arg0, %c0_i32 : i32, i32
  }
}

</mosaic_0001>

<llo_original>
// kernel: tpu_custom_call.1
$region0: #{tpu_custom_call.1}
  #allocation0 [shape = 'u32[]', space=smem, size = 0x4, offset = 0x4, fixed_abs, tag = 'smem constant byte address 0x4 - core index']
  #allocation1 [shape = 'u32[144,128]{1,0:T(1,128)}', space=vmem, size = 0x12000, scoped, tag = 'internal scratch']
  #allocation2 [shape = 'f32[8,16]{1,0:T(8,128)}', space=vmem, size = 0x1000, scoped, tag = 'scratch operand']
  %s0 = inlined_call_operand.vmem [shape: f32[8,12], index: 0, kind: input, shape index: {}]
  %s1 = inlined_call_operand.vmem [shape: f32[8,4], index: 1, kind: input, shape index: {}]
  %s2 = inlined_call_operand.vmem [shape: f32[144,64], index: 2, kind: input, shape index: {}]
  %s3 = inlined_call_operand.vmem [shape: f32[3,64], index: 3, kind: input, shape index: {}]
  %s4 = inlined_call_operand.vmem [shape: f32[8,2], index: 4, kind: output, shape index: {}]
  %s5 = sld [smem:[#allocation0]]
  $region26: #{tpu_custom_call.1} parent=0
    _
  %s7 = ssub.s32 1, %s5
  %s8 = scalar_select 0, %s7, %s5
  // Predicated region
  $region2: #{tpu_custom_call.1} parent=0 // pred_check
    _
  $region3: #{tpu_custom_call.1} parent=0 // pred_check_branch
    %10 = sbr.rel (0) target = $region5
  $region4: #{tpu_custom_call.1} parent=0 // pred_region
    _
  $region5: #{tpu_custom_call.1} parent=0 // pred_fallthru
    _
  // Predicated region
  $region6: #{tpu_custom_call.1} parent=0 // pred_check
    _
  $region7: #{tpu_custom_call.1} parent=0 // pred_check_branch
    %12 = sbr.rel (0) target = $region9
  $region8: #{tpu_custom_call.1} parent=0 // pred_region
    _
  $region9: #{tpu_custom_call.1} parent=0 // pred_fallthru
    _
  // Predicated region
  $region10: #{tpu_custom_call.1} parent=0 // pred_check
    _
  $region11: #{tpu_custom_call.1} parent=0 // pred_check_branch
    %14 = sbr.rel (0) target = $region13
  $region12: #{tpu_custom_call.1} parent=0 // pred_region
    _
  $region13: #{tpu_custom_call.1} parent=0 // pred_fallthru
    _
  // Predicated region
  $region14: #{tpu_custom_call.1} parent=0 // pred_check
    _
  $region15: #{tpu_custom_call.1} parent=0 // pred_check_branch
    %16 = sbr.rel (0) target = $region17
  $region16: #{tpu_custom_call.1} parent=0 // pred_region
    _
  $region17: #{tpu_custom_call.1} parent=0 // pred_fallthru
    _
  %v17 = vld [vmem:[%s0] sm:$0xff]
  %vm18 = vcmask 97280
  %19 = vst.msk [vmem:[#allocation2] sm:$0xff] %vm18, %v17
  %v20 = vld [vmem:[%s1] sm:$0xff]
  %22 = vrot.lane.b32.xlu0 %v20, 12
  %v23 = vpop.permute.xlu0 %22
  %vm25 = vcmask 130144
  %26 = vst.msk [vmem:[#allocation2] sm:$0xff] %vm25, %v23
  %v27 = vld [vmem:[#allocation2] sm:$0xff]
  %v28 = vld [vmem:[%s2] sm:$0xff]
  %v29 = vld [vmem:[%s2 + $0x8] sm:$0xff]
  %v30 = vld [vmem:[%s3] sm:$0x1]
  %v31 = vlaneseq
  %v32 = vshrl.u32 %v31, 7
  %v33 = vsub.s32 0, %v32
  %v34 = vrot.slane %v30, %v33
  %vm35 = vcmask 130048
  %v37 = vsel %vm35, %v27, 0
  %39 = vmatprep.subr.mxu0 0.0
  %40 = vmatpush1.msra.mxu0 0.0
  %41 = vmatprep.subr.mxu0 0.0
  %42 = vmatpush1.msra.mxu0 0.0
  %43 = vmatprep.subr.mxu0 0.0
  %44 = vmatpush1.msra.mxu0 0.0
  %45 = vmatprep.subr.mxu0 0.0
  %46 = vmatpush1.msra.mxu0 0.0
  %47 = vmatprep.subr.mxu0 0.0
  %48 = vmatpush1.msra.mxu0 0.0
  %49 = vmatprep.subr.mxu0 0.0
  %50 = vmatpush1.msra.mxu0 0.0
  %51 = vmatprep.subr.mxu0 0.0
  %52 = vmatpush1.msra.mxu0 0.0
  %53 = vmatprep.subr.mxu0 0.0
  %54 = vmatpush1.msra.mxu0 0.0
  %55 = vmatprep.subr.mxu0 0.0
  %56 = vmatpush1.msra.mxu0 0.0
  %57 = vmatprep.subr.mxu0 0.0
  %58 = vmatpush1.msra.mxu0 0.0
  %59 = vmatprep.subr.mxu0 0.0
  %60 = vmatpush1.msra.mxu0 0.0
  %61 = vmatprep.subr.mxu0 0.0
  %62 = vmatpush1.msra.mxu0 0.0
  %63 = vmatprep.subr.mxu0 0.0
  %64 = vmatpush1.msra.mxu0 0.0
  %65 = vmatprep.subr.mxu0 0.0
  %66 = vmatpush1.msra.mxu0 0.0
  %67 = vmatprep.subr.mxu0 0.0
  %68 = vmatpush1.msra.mxu0 %v29
  %69 = vmatprep.subr.mxu0 0.0
  %70 = vmatpush1.msra.mxu0 %v28
  %71 = vmatprep.subr.mxu0 0.0
  %72 = vmatpush2.msra.mxu0 0.0
  %73 = vmatprep.subr.mxu0 0.0
  %74 = vmatpush2.msra.mxu0 0.0
  %75 = vmatprep.subr.mxu0 0.0
  %76 = vmatpush2.msra.mxu0 0.0
  %77 = vmatprep.subr.mxu0 0.0
  %78 = vmatpush2.msra.mxu0 0.0
  %79 = vmatprep.subr.mxu0 0.0
  %80 = vmatpush2.msra.mxu0 0.0
  %81 = vmatprep.subr.mxu0 0.0
  %82 = vmatpush2.msra.mxu0 0.0
  %83 = vmatprep.subr.mxu0 0.0
  %84 = vmatpush2.msra.mxu0 0.0
  %85 = vmatprep.subr.mxu0 0.0
  %86 = vmatpush2.msra.mxu0 0.0
  %87 = vmatprep.subr.mxu0 0.0
  %88 = vmatpush2.msra.mxu0 0.0
  %89 = vmatprep.subr.mxu0 0.0
  %90 = vmatpush2.msra.mxu0 0.0
  %91 = vmatprep.subr.mxu0 0.0
  %92 = vmatpush2.msra.mxu0 0.0
  %93 = vmatprep.subr.mxu0 0.0
  %94 = vmatpush2.msra.mxu0 0.0
  %95 = vmatprep.subr.mxu0 0.0
  %96 = vmatpush2.msra.mxu0 0.0
  %97 = vmatprep.subr.mxu0 0.0
  %98 = vmatpush2.msra.mxu0 0.0
  %99 = vmatprep.subr.mxu0 0.0
  %100 = vmatpush2.msra.mxu0 0.0
  %101 = vmatprep.subr.mxu0 0.0
  %102 = vmatpush2.msra.mxu0 0.0
  %103 = vmatprep.mubr.f32.mxu0 0.0
  %104 = vmatmul.mubr.f32.gmra.mxu0 %v37
  %v105 = vpop.f32.mrf.mxu0
  %v106 = vadd.f32 %v34, %v105
  %v107 = vpop.f32.mrf.mxu0
  %108 = vdwg.mxu0
  %v109 = vmax.f32 %v106, 0.0
  %v110 = vld [vmem:[%s2 + $0x10] sm:$0xff]
  %v111 = vld [vmem:[%s2 + $0x18] sm:$0xff]
  %v112 = vld [vmem:[%s2 + $0x20] sm:$0xff]
  %v113 = vld [vmem:[%s2 + $0x28] sm:$0xff]
  %v114 = vld [vmem:[%s2 + $0x30] sm:$0xff]
  %v115 = vld [vmem:[%s2 + $0x38] sm:$0xff]
  %v116 = vld [vmem:[%s2 + $0x40] sm:$0xff]
  %v117 = vld [vmem:[%s2 + $0x48] sm:$0xff]
  %v118 = vld [vmem:[%s3 + $0x1] sm:$0x1]
  %v119 = vlaneseq
  %v120 = vshrl.u32 %v119, 7
  %v121 = vsub.s32 0, %v120
  %v122 = vrot.slane %v118, %v121
  %vm123 = vcmask 523264
  %v125 = vsel %vm123, %v109, 0
  %127 = vmatprep.subr.mxu0 0.0
  %128 = vmatpush1.msra.mxu0 0.0
  %129 = vmatprep.subr.mxu0 0.0
  %130 = vmatpush1.msra.mxu0 0.0
  %131 = vmatprep.subr.mxu0 0.0
  %132 = vmatpush1.msra.mxu0 0.0
  %133 = vmatprep.subr.mxu0 0.0
  %134 = vmatpush1.msra.mxu0 0.0
  %135 = vmatprep.subr.mxu0 0.0
  %136 = vmatpush1.msra.mxu0 0.0
  %137 = vmatprep.subr.mxu0 0.0
  %138 = vmatpush1.msra.mxu0 0.0
  %139 = vmatprep.subr.mxu0 0.0
  %140 = vmatpush1.msra.mxu0 0.0
  %141 = vmatprep.subr.mxu0 0.0
  %142 = vmatpush1.msra.mxu0 0.0
  %143 = vmatprep.subr.mxu0 0.0
  %144 = vmatpush1.msra.mxu0 %v117
  %145 = vmatprep.subr.mxu0 0.0
  %146 = vmatpush1.msra.mxu0 %v116
  %147 = vmatprep.subr.mxu0 0.0
  %148 = vmatpush1.msra.mxu0 %v115
  %149 = vmatprep.subr.mxu0 0.0
  %150 = vmatpush1.msra.mxu0 %v114
  %151 = vmatprep.subr.mxu0 0.0
  %152 = vmatpush1.msra.mxu0 %v113
  %153 = vmatprep.subr.mxu0 0.0
  %154 = vmatpush1.msra.mxu0 %v112
  %155 = vmatprep.subr.mxu0 0.0
  %156 = vmatpush1.msra.mxu0 %v111
  %157 = vmatprep.subr.mxu0 0.0
  %158 = vmatpush1.msra.mxu0 %v110
  %159 = vmatprep.subr.mxu0 0.0
  %160 = vmatpush2.msra.mxu0 0.0
  %161 = vmatprep.subr.mxu0 0.0
  %162 = vmatpush2.msra.mxu0 0.0
  %163 = vmatprep.subr.mxu0 0.0
  %164 = vmatpush2.msra.mxu0 0.0
  %165 = vmatprep.subr.mxu0 0.0
  %166 = vmatpush2.msra.mxu0 0.0
  %167 = vmatprep.subr.mxu0 0.0
  %168 = vmatpush2.msra.mxu0 0.0
  %169 = vmatprep.subr.mxu0 0.0
  %170 = vmatpush2.msra.mxu0 0.0
  %171 = vmatprep.subr.mxu0 0.0
  %172 = vmatpush2.msra.mxu0 0.0
  %173 = vmatprep.subr.mxu0 0.0
  %174 = vmatpush2.msra.mxu0 0.0
  %175 = vmatprep.subr.mxu0 0.0
  %176 = vmatpush2.msra.mxu0 0.0
  %177 = vmatprep.subr.mxu0 0.0
  %178 = vmatpush2.msra.mxu0 0.0
  %179 = vmatprep.subr.mxu0 0.0
  %180 = vmatpush2.msra.mxu0 0.0
  %181 = vmatprep.subr.mxu0 0.0
  %182 = vmatpush2.msra.mxu0 0.0
  %183 = vmatprep.subr.mxu0 0.0
  %184 = vmatpush2.msra.mxu0 0.0
  %185 = vmatprep.subr.mxu0 0.0
  %186 = vmatpush2.msra.mxu0 0.0
  %187 = vmatprep.subr.mxu0 0.0
  %188 = vmatpush2.msra.mxu0 0.0
  %189 = vmatprep.subr.mxu0 0.0
  %190 = vmatpush2.msra.mxu0 0.0
  %191 = vmatprep.mubr.f32.mxu0 0.0
  %192 = vmatmul.mubr.f32.gmra.mxu0 %v125
  %v193 = vpop.f32.mrf.mxu0
  %v194 = vadd.f32 %v122, %v193
  %v195 = vpop.f32.mrf.mxu0
  %196 = vdwg.mxu0
  %v197 = vmax.f32 %v194, 0.0
  %v198 = vld [vmem:[%s2 + $0x50] sm:$0xff]
  %v199 = vld [vmem:[%s2 + $0x58] sm:$0xff]
  %v200 = vld [vmem:[%s2 + $0x60] sm:$0xff]
  %v201 = vld [vmem:[%s2 + $0x68] sm:$0xff]
  %v202 = vld [vmem:[%s2 + $0x70] sm:$0xff]
  %v203 = vld [vmem:[%s2 + $0x78] sm:$0xff]
  %v204 = vld [vmem:[%s2 + $0x80] sm:$0xff]
  %v205 = vld [vmem:[%s2 + $0x88] sm:$0xff]
  %v206 = vld [vmem:[%s3 + $0x2] sm:$0x1]
  %v207 = vlaneseq
  %v208 = vshrl.u32 %v207, 7
  %v209 = vsub.s32 0, %v208
  %v210 = vrot.slane %v206, %v209
  %v212 = vsel %vm123, %v197, 0
  %214 = vmatprep.subr.mxu0 0.0
  %215 = vmatpush1.msra.mxu0 0.0
  %216 = vmatprep.subr.mxu0 0.0
  %217 = vmatpush1.msra.mxu0 0.0
  %218 = vmatprep.subr.mxu0 0.0
  %219 = vmatpush1.msra.mxu0 0.0
  %220 = vmatprep.subr.mxu0 0.0
  %221 = vmatpush1.msra.mxu0 0.0
  %222 = vmatprep.subr.mxu0 0.0
  %223 = vmatpush1.msra.mxu0 0.0
  %224 = vmatprep.subr.mxu0 0.0
  %225 = vmatpush1.msra.mxu0 0.0
  %226 = vmatprep.subr.mxu0 0.0
  %227 = vmatpush1.msra.mxu0 0.0
  %228 = vmatprep.subr.mxu0 0.0
  %229 = vmatpush1.msra.mxu0 0.0
  %230 = vmatprep.subr.mxu0 0.0
  %231 = vmatpush1.msra.mxu0 %v205
  %232 = vmatprep.subr.mxu0 0.0
  %233 = vmatpush1.msra.mxu0 %v204
  %234 = vmatprep.subr.mxu0 0.0
  %235 = vmatpush1.msra.mxu0 %v203
  %236 = vmatprep.subr.mxu0 0.0
  %237 = vmatpush1.msra.mxu0 %v202
  %238 = vmatprep.subr.mxu0 0.0
  %239 = vmatpush1.msra.mxu0 %v201
  %240 = vmatprep.subr.mxu0 0.0
  %241 = vmatpush1.msra.mxu0 %v200
  %242 = vmatprep.subr.mxu0 0.0
  %243 = vmatpush1.msra.mxu0 %v199
  %244 = vmatprep.subr.mxu0 0.0
  %245 = vmatpush1.msra.mxu0 %v198
  %246 = vmatprep.subr.mxu0 0.0
  %247 = vmatpush2.msra.mxu0 0.0
  %248 = vmatprep.subr.mxu0 0.0
  %249 = vmatpush2.msra.mxu0 0.0
  %250 = vmatprep.subr.mxu0 0.0
  %251 = vmatpush2.msra.mxu0 0.0
  %252 = vmatprep.subr.mxu0 0.0
  %253 = vmatpush2.msra.mxu0 0.0
  %254 = vmatprep.subr.mxu0 0.0
  %255 = vmatpush2.msra.mxu0 0.0
  %256 = vmatprep.subr.mxu0 0.0
  %257 = vmatpush2.msra.mxu0 0.0
  %258 = vmatprep.subr.mxu0 0.0
  %259 = vmatpush2.msra.mxu0 0.0
  %260 = vmatprep.subr.mxu0 0.0
  %261 = vmatpush2.msra.mxu0 0.0
  %262 = vmatprep.subr.mxu0 0.0
  %263 = vmatpush2.msra.mxu0 0.0
  %264 = vmatprep.subr.mxu0 0.0
  %265 = vmatpush2.msra.mxu0 0.0
  %266 = vmatprep.subr.mxu0 0.0
  %267 = vmatpush2.msra.mxu0 0.0
  %268 = vmatprep.subr.mxu0 0.0
  %269 = vmatpush2.msra.mxu0 0.0
  %270 = vmatprep.subr.mxu0 0.0
  %271 = vmatpush2.msra.mxu0 0.0
  %272 = vmatprep.subr.mxu0 0.0
  %273 = vmatpush2.msra.mxu0 0.0
  %274 = vmatprep.subr.mxu0 0.0
  %275 = vmatpush2.msra.mxu0 0.0
  %276 = vmatprep.subr.mxu0 0.0
  %277 = vmatpush2.msra.mxu0 0.0
  %278 = vmatprep.mubr.f32.mxu0 0.0
  %279 = vmatmul.mubr.f32.gmra.mxu0 %v212
  %v280 = vpop.f32.mrf.mxu0
  %v281 = vadd.f32 %v210, %v280
  %v282 = vpop.f32.mrf.mxu0
  %283 = vdwg.mxu0
  %vm284 = vcmask 15360
  %285 = vst.msk [vmem:[%s4] sm:$0xff] %vm284, %v281
  // Predicated region
  $region18: #{tpu_custom_call.1} parent=0 // pred_check
    _
  $region19: #{tpu_custom_call.1} parent=0 // pred_check_branch
    %287 = sbr.rel (0) target = $region21
  $region20: #{tpu_custom_call.1} parent=0 // pred_region
    _
  $region21: #{tpu_custom_call.1} parent=0 // pred_fallthru
    _
  // Predicated region
  $region22: #{tpu_custom_call.1} parent=0 // pred_check
    _
  $region23: #{tpu_custom_call.1} parent=0 // pred_check_branch
    %289 = sbr.rel (0) target = $region25
  $region24: #{tpu_custom_call.1} parent=0 // pred_region
    _
  $region25: #{tpu_custom_call.1} parent=0 // pred_fallthru
    _

</llo_original>
